<compile_context>
chip_gen: v7x
topology: tpu7x:2x2x1
jax: 0.10.0
libtpu: 0.0.40
codegen_flags: <defaults>
</compile_context>

<pallas_src>
import functools

import jax
import jax.numpy as jnp
from jax.experimental import pallas as pl
from jax.experimental.pallas import tpu as pltpu


# ----------------------------------------------------------------------------
# Fused channel-attention kernel: Nb images per grid step.
# ----------------------------------------------------------------------------
def _rc_ca_kernel(x_ref, w1_ref, b1_ref, w2_ref, b2_ref, o_ref, *, inv_hw):
    # x_ref : (Nb, C, HWp)  activation block, lane-dense along HWp
    # w1_ref: (Cr, C)       squeeze 1x1 conv weight   b1_ref: (Cr, 1)
    # w2_ref: (C, Cr)       excite 1x1 conv weight    b2_ref: (C, 1)
    # o_ref : (Nb, C, HWp)
    nb, c, hwp = x_ref.shape
    cr = w1_ref.shape[0]

    x = x_ref[...]                                        # native dtype block

    # Global average pool on the MXU: batched matmul against a ones column,
    # f32 accumulation.  Padded HW lanes are zeros, so dividing by the true
    # H*W (inv_hw) keeps the mean exact.
    ones_col = jnp.ones((nb, hwp, 1), x.dtype)
    pooled = jnp.einsum("nch,nhk->nck", x, ones_col,
                        preferred_element_type=jnp.float32) * inv_hw  # (Nb,C,1)

    # conv_du: 1x1 conv -> ReLU -> 1x1 conv -> sigmoid.  Channels stay on the
    # sublane axis throughout; these matmuls are tiny and amortized over the
    # Nb images in the block.
    w1b = jnp.broadcast_to(w1_ref[...][None], (nb, cr, c))
    z = jnp.einsum("njc,nck->njk", w1b, pooled,
                   preferred_element_type=jnp.float32) + b1_ref[...][None]
    z = jnp.maximum(z, 0.0)                               # (Nb, Cr, 1)

    w2b = jnp.broadcast_to(w2_ref[...][None], (nb, c, cr))
    s = jnp.einsum("njc,nck->njk", w2b, z,
                   preferred_element_type=jnp.float32) + b2_ref[...][None]
    s = jax.nn.sigmoid(s)                                 # (Nb, C, 1) f32

    # Channel-wise gating in the input dtype (no full-block f32 temp).
    o_ref[...] = (x * s.astype(x.dtype)).astype(o_ref.dtype)


def _pick_nb(n, c, hwp, itemsize):
    """Images per block: aim for a few-MiB block, keep >=2 grid steps."""
    per_image = c * hwp * itemsize
    budget = 4 * 1024 * 1024                # ~4 MiB per (input or output) block
    cap = max(1, min(32, budget // max(per_image, 1)))
    if n >= 2:
        cap = max(1, min(cap, n // 2))      # >=2 parallel steps (v7x: 2 TCs)
    nb = 1
    for d in range(1, cap + 1):             # largest divisor of n <= cap
        if n % d == 0:
            nb = d
    return nb


@functools.lru_cache(maxsize=None)
def _make_rc_ca(N, C, HW, HWp, Cr, dtype_name):
    dtype = jnp.dtype(dtype_name)
    nb = _pick_nb(N, C, HWp, dtype.itemsize)
    block_bytes = nb * C * HWp * dtype.itemsize
    # 2x double-buffered input + 2x output blocks + weights/temps + headroom.
    vmem_limit = max(32 * 1024 * 1024, 4 * block_bytes + 4 * 1024 * 1024)

    kernel = functools.partial(_rc_ca_kernel, inv_hw=1.0 / float(HW))
    return pl.pallas_call(
        kernel,
        out_shape=jax.ShapeDtypeStruct((N, C, HWp), dtype),
        grid=(N // nb,),
        in_specs=[
            pl.BlockSpec((nb, C, HWp), lambda i: (i, 0, 0)),
            pl.BlockSpec((Cr, C), lambda i: (0, 0)),
            pl.BlockSpec((Cr, 1), lambda i: (0, 0)),
            pl.BlockSpec((C, Cr), lambda i: (0, 0)),
            pl.BlockSpec((C, 1), lambda i: (0, 0)),
        ],
        out_specs=pl.BlockSpec((nb, C, HWp), lambda i: (i, 0, 0)),
        compiler_params=pltpu.CompilerParams(
            dimension_semantics=("parallel",),      # batch axis -> both TCs
            vmem_limit_bytes=int(vmem_limit),
        ),
    )


def rc_ca_layer(x_nchw, w1, b1, w2, b2):
    """RC_CALayer.forward: x * sigmoid(conv2(relu(conv1(avg_pool(x)))))."""
    N, C, H, W = x_nchw.shape
    Cr = w1.shape[0]
    HW = H * W
    HWp = 128 * pl.cdiv(HW, 128)            # guarantee lane-dense stores
    x2 = x_nchw.reshape(N, C, HW)           # free contiguous view
    if HWp != HW:
        x2 = jnp.pad(x2, ((0, 0), (0, 0), (0, HWp - HW)))
    fn = _make_rc_ca(N, C, HW, HWp, Cr, str(x_nchw.dtype))
    out = fn(x2, w1, b1.reshape(Cr, 1), w2, b2.reshape(C, 1))
    if HWp != HW:
        out = out[..., :HW]
    return out.reshape(N, C, H, W)


# ----------------------------------------------------------------------------
# Pure-JAX reference (mirrors the PyTorch module) for correctness checking.
# ----------------------------------------------------------------------------
def rc_ca_reference(x, w1, b1, w2, b2):
    y = jnp.mean(x, axis=(2, 3), keepdims=True)                     # (N,C,1,1)
    z = jnp.einsum("oc,nchw->nohw", w1, y) + b1.reshape(1, -1, 1, 1)
    z = jnp.maximum(z, 0.0)
    s = jnp.einsum("oc,nchw->nohw", w2, z) + b2.reshape(1, -1, 1, 1)
    s = jax.nn.sigmoid(s)
    return x * s


if __name__ == "__main__":
    key = jax.random.PRNGKey(0)
    N, C, H, W = 2, 32, 16, 16
    REDUCTION = 16                          # PyTorch default
    Cr = C // REDUCTION

    k1, k2, k3, k4, k5 = jax.random.split(key, 5)
    x = jax.random.normal(k1, (N, C, H, W), jnp.float32)
    # 1x1 conv weights as (out_ch, in_ch); biases as 1-D, like nn.Conv2d.
    w1 = jax.random.normal(k2, (Cr, C), jnp.float32) * 0.1
    b1 = jax.random.normal(k3, (Cr,), jnp.float32) * 0.1
    w2 = jax.random.normal(k4, (C, Cr), jnp.float32) * 0.1
    b2 = jax.random.normal(k5, (C,), jnp.float32) * 0.1

    fwd = jax.jit(rc_ca_layer)
    out = jax.block_until_ready(fwd(x, w1, b1, w2, b2))

    assert out.shape == (N, C, H, W), out.shape
    assert bool(jnp.all(jnp.isfinite(out)))
    ref = rc_ca_reference(x, w1, b1, w2, b2)
    err = float(jnp.max(jnp.abs(out - ref)))
    assert bool(jnp.allclose(out, ref, atol=1e-3, rtol=1e-3)), err
    print("KERNEL_OK")
</pallas_src>

<mosaic_0001>
module attributes {stable_mosaic.version = 11 : i64} {
  func.func @_rc_ca_kernel(%arg0: i32, %arg1: memref<1x32x256xf32, #tpu.memory_space<vmem>>, %arg2: memref<2x32xf32, #tpu.memory_space<vmem>>, %arg3: memref<2x1xf32, #tpu.memory_space<vmem>>, %arg4: memref<32x2xf32, #tpu.memory_space<vmem>>, %arg5: memref<32x1xf32, #tpu.memory_space<vmem>>, %arg6: memref<1x32x256xf32, #tpu.memory_space<vmem>>) attributes {dimension_semantics = [#tpu.dimension_semantics<parallel>], iteration_bounds = array<i64: 2>, scalar_prefetch = 0 : i64, scratch_operands = 0 : i64, tpu.core_type = #tpu.core_type<tc>, window_params = [{transform_indices = @transform_0, window_bounds = array<i64: 1, 32, 256>}, {pipeline_mode = #tpu.pipeline_mode<synchronous>, transform_indices = @transform_1, window_bounds = array<i64: 2, 32>}, {pipeline_mode = #tpu.pipeline_mode<synchronous>, transform_indices = @transform_2, window_bounds = array<i64: 2, 1>}, {pipeline_mode = #tpu.pipeline_mode<synchronous>, transform_indices = @transform_3, window_bounds = array<i64: 32, 2>}, {pipeline_mode = #tpu.pipeline_mode<synchronous>, transform_indices = @transform_4, window_bounds = array<i64: 32, 1>}, {transform_indices = @transform_5, window_bounds = array<i64: 1, 32, 256>}]} {
    %c0 = arith.constant 0 : index
    %c0_0 = arith.constant 0 : index
    %c0_1 = arith.constant 0 : index
    %0 = vector.load %arg1[%c0, %c0_0, %c0_1] : memref<1x32x256xf32, #tpu.memory_space<vmem>>, vector<1x32x256xf32>
    %cst = arith.constant 1.000000e+00 : f32
    %1 = vector.broadcast %cst : f32 to vector<1x256x1xf32>
    "tpu.trace_start"() <{level = 10 : i32, message = "nch,nhk->nck"}> : () -> ()
    %cst_2 = arith.constant dense<0.000000e+00> : vector<1x32x1xf32>
    %2 = tpu.matmul %0, %1, %cst_2 {dimension_numbers = #tpu.dot_dimension_numbers<[2], [1], [1], [2], [0, 0, 0, 1, 1, 2], [0], [0]>} : vector<1x32x256xf32>, vector<1x256x1xf32>, vector<1x32x1xf32> -> vector<1x32x1xf32>
    "tpu.trace_stop"() : () -> ()
    %cst_3 = arith.constant 3.906250e-03 : f32
    %3 = vector.broadcast %cst_3 : f32 to vector<1x32x1xf32>
    %4 = arith.mulf %2, %3 : vector<1x32x1xf32>
    %c0_4 = arith.constant 0 : index
    %c0_5 = arith.constant 0 : index
    %5 = vector.load %arg2[%c0_4, %c0_5] : memref<2x32xf32, #tpu.memory_space<vmem>>, vector<2x32xf32>
    %6 = vector.shape_cast %5 : vector<2x32xf32> to vector<1x2x32xf32>
    "tpu.trace_start"() <{level = 10 : i32, message = "njc,nck->njk"}> : () -> ()
    %cst_6 = arith.constant dense<0.000000e+00> : vector<1x2x1xf32>
    %7 = tpu.matmul %6, %4, %cst_6 {dimension_numbers = #tpu.dot_dimension_numbers<[2], [1], [1], [2], [0, 0, 0, 1, 1, 2], [0], [0]>} : vector<1x2x32xf32>, vector<1x32x1xf32>, vector<1x2x1xf32> -> vector<1x2x1xf32>
    "tpu.trace_stop"() : () -> ()
    %c0_7 = arith.constant 0 : index
    %c0_8 = arith.constant 0 : index
    %8 = vector.load %arg3[%c0_7, %c0_8] : memref<2x1xf32, #tpu.memory_space<vmem>>, vector<2x1xf32>
    %9 = vector.shape_cast %8 : vector<2x1xf32> to vector<1x2x1xf32>
    %10 = arith.addf %7, %9 : vector<1x2x1xf32>
    %cst_9 = arith.constant 0.000000e+00 : f32
    %11 = vector.broadcast %cst_9 : f32 to vector<1x2x1xf32>
    %12 = arith.maximumf %10, %11 : vector<1x2x1xf32>
    %c0_10 = arith.constant 0 : index
    %c0_11 = arith.constant 0 : index
    %13 = vector.load %arg4[%c0_10, %c0_11] : memref<32x2xf32, #tpu.memory_space<vmem>>, vector<32x2xf32>
    %14 = vector.shape_cast %13 : vector<32x2xf32> to vector<1x32x2xf32>
    "tpu.trace_start"() <{level = 10 : i32, message = "njc,nck->njk"}> : () -> ()
    %cst_12 = arith.constant dense<0.000000e+00> : vector<1x32x1xf32>
    %15 = tpu.matmul %14, %12, %cst_12 {dimension_numbers = #tpu.dot_dimension_numbers<[2], [1], [1], [2], [0, 0, 0, 1, 1, 2], [0], [0]>} : vector<1x32x2xf32>, vector<1x2x1xf32>, vector<1x32x1xf32> -> vector<1x32x1xf32>
    "tpu.trace_stop"() : () -> ()
    %c0_13 = arith.constant 0 : index
    %c0_14 = arith.constant 0 : index
    %16 = vector.load %arg5[%c0_13, %c0_14] : memref<32x1xf32, #tpu.memory_space<vmem>>, vector<32x1xf32>
    %17 = vector.shape_cast %16 : vector<32x1xf32> to vector<1x32x1xf32>
    %18 = arith.addf %15, %17 : vector<1x32x1xf32>
    %19 = arith.negf %18 : vector<1x32x1xf32>
    %20 = math.exp %19 : vector<1x32x1xf32>
    %cst_15 = arith.constant 1.000000e+00 : f32
    %21 = vector.broadcast %cst_15 : f32 to vector<1x32x1xf32>
    %22 = arith.addf %21, %20 : vector<1x32x1xf32>
    %23 = arith.divf %21, %22 : vector<1x32x1xf32>
    %24 = vector.broadcast %23 : vector<1x32x1xf32> to vector<1x32x256xf32>
    %25 = arith.mulf %0, %24 : vector<1x32x256xf32>
    %c0_16 = arith.constant 0 : index
    %c0_17 = arith.constant 0 : index
    %c0_18 = arith.constant 0 : index
    %26 = vector.load %arg6[%c0_16, %c0_17, %c0_18] : memref<1x32x256xf32, #tpu.memory_space<vmem>>, vector<1x32x256xf32>
    tpu.vector_store %arg6[%c0_16, %c0_17, %c0_18], %25 {strides = array<i32>} : memref<1x32x256xf32, #tpu.memory_space<vmem>>, vector<1x32x256xf32>,
    return
  }
  func.func @transform_0(%arg0: i32) -> (i32, i32, i32) {
    %c0_i32 = arith.constant 0 : i32
    %c0_i32_0 = arith.constant 0 : i32
    %c0_i32_1 = arith.constant 0 : i32
    return %arg0, %c0_i32, %c0_i32_0 : i32, i32, i32
  }
  func.func @transform_1(%arg0: i32) -> (i32, i32) {
    %c0_i32 = arith.constant 0 : i32
    %c0_i32_0 = arith.constant 0 : i32
    %c0_i32_1 = arith.constant 0 : i32
    return %c0_i32, %c0_i32_0 : i32, i32
  }
  func.func @transform_2(%arg0: i32) -> (i32, i32) {
    %c0_i32 = arith.constant 0 : i32
    %c0_i32_0 = arith.constant 0 : i32
    %c0_i32_1 = arith.constant 0 : i32
    return %c0_i32, %c0_i32_0 : i32, i32
  }
  func.func @transform_3(%arg0: i32) -> (i32, i32) {
    %c0_i32 = arith.constant 0 : i32
    %c0_i32_0 = arith.constant 0 : i32
    %c0_i32_1 = arith.constant 0 : i32
    return %c0_i32, %c0_i32_0 : i32, i32
  }
  func.func @transform_4(%arg0: i32) -> (i32, i32) {
    %c0_i32 = arith.constant 0 : i32
    %c0_i32_0 = arith.constant 0 : i32
    %c0_i32_1 = arith.constant 0 : i32
    return %c0_i32, %c0_i32_0 : i32, i32
  }
  func.func @transform_5(%arg0: i32) -> (i32, i32, i32) {
    %c0_i32 = arith.constant 0 : i32
    %c0_i32_0 = arith.constant 0 : i32
    %c0_i32_1 = arith.constant 0 : i32
    return %arg0, %c0_i32, %c0_i32_0 : i32, i32, i32
  }
}

</mosaic_0001>

<llo_original>
// kernel: rc_ca_layer.1
$region0: #{rc_ca_layer.1}
  #allocation0 [shape = 'u32[]', space=smem, size = 0x4, offset = 0x4, fixed_abs, tag = 'smem constant byte address 0x4 - core index']
  #allocation1 [shape = 'u32[144,128]{1,0:T(1,128)}', space=vmem, size = 0x12000, scoped, tag = 'internal scratch']
  %s0 = inlined_call_operand.vmem [shape: f32[2,32,256], index: 0, kind: input, shape index: {}]
  %s1 = inlined_call_operand.vmem [shape: f32[2,32], index: 1, kind: input, shape index: {}]
  %s2 = inlined_call_operand.vmem [shape: f32[2,1], index: 2, kind: input, shape index: {}]
  %s3 = inlined_call_operand.vmem [shape: f32[32,2], index: 3, kind: input, shape index: {}]
  %s4 = inlined_call_operand.vmem [shape: f32[32,1], index: 4, kind: input, shape index: {}]
  %s5 = inlined_call_operand.vmem [shape: f32[2,32,256], index: 5, kind: output, shape index: {}]
  %s6 = sld [smem:[#allocation0]]
  $region53: #{rc_ca_layer.1} parent=0
    _
  %s8 = ssub.s32 1, %s6
  %s9 = scalar_select 0, %s8, %s6
  loop: start=0, step=1, limit=4
  $region2: #{rc_ca_layer.1} parent=0 // loop_pre_header
    _
  $region3: #{rc_ca_layer.1} parent=0 // loop_header
    %s11 = sphi 0, %s15
    %p12 = scmp.ge.s32.totalorder %s11, 4
    %s21 = sphi 0, %s23
    %s24 = sphi 0, %s21
    %s25 = sphi 0, %s24
    %s41 = sphi 0, %s25
    %s45 = sphi 0, %s45
    %s47 = sphi 0, %s45
    %s48 = sphi 0, %s47
    %s62 = sphi 0, %s48
    %s66 = sphi 0, %s66
    %s68 = sphi 0, %s66
    %s69 = sphi 0, %s68
    %s83 = sphi 0, %s69
    %s87 = sphi 0, %s87
    %s89 = sphi 0, %s87
    %s90 = sphi 0, %s89
    %s104 = sphi 0, %s90
    %s108 = sphi 0, %s108
    %s110 = sphi 0, %s108
    %s111 = sphi 0, %s110
    %s125 = sphi 0, %s111
    %s131 = sphi 0, %s133
    %s134 = sphi 0, %s131
    %s135 = sphi 0, %s134
    %s151 = sphi 0, %s135
  $region4: #{rc_ca_layer.1} parent=0 // loop_header_branch
    %14 = sbr.rel (%p12) target = $region8
  $region5: #{rc_ca_layer.1} parent=0 // loop_body
    %s16 = ssub.s32 %s11, 1
    %s17 = ssub.s32 %s11, 2
    %s18 = sadd.s32 %s11, 1
    %s19 = ssub.s32 %s11, %s18
    %p20 = scmp.eq.s32.totalorder %s19, 0
    %s22 = sadd.s32 %s21, 1
    %s23 = scalar_select %p20, %s21, %s22
    %p26 = pneg %p20
    %p27 = scmp.eq.s32.totalorder %s11, 1
    %p28 = por %p26, %p27
    %p29 = scmp.ne.s32.totalorder %s21, %s24
    %p30 = scmp.eq.s32.totalorder %s11, 0
    %p31 = por %p29, %p30
    %p32 = scmp.ne.s32.totalorder %s21, %s24
    %p33 = scmp.eq.s32.totalorder %s16, 1
    %p34 = por %p32, %p33
    %p35 = scmp.ne.s32.totalorder %s24, %s25
    %p36 = scmp.eq.s32.totalorder %s16, 0
    %p37 = por %p35, %p36
    %p38 = scmp.ne.s32.totalorder %s24, %s25
    %p39 = scmp.eq.s32.totalorder %s17, 1
    %p40 = por %p38, %p39
    %p42 = scmp.ne.s32.totalorder %s25, %s41
    %p43 = scmp.eq.s32.totalorder %s17, 0
    %p44 = por %p42, %p43
    %s46 = sadd.s32 %s45, 1
    %p49 = scmp.eq.s32.totalorder %s11, 1
    %p50 = scmp.ne.s32.totalorder %s45, %s47
    %p51 = scmp.eq.s32.totalorder %s11, 0
    %p52 = por %p50, %p51
    %p53 = scmp.ne.s32.totalorder %s45, %s47
    %p54 = scmp.eq.s32.totalorder %s16, 1
    %p55 = por %p53, %p54
    %p56 = scmp.ne.s32.totalorder %s47, %s48
    %p57 = scmp.eq.s32.totalorder %s16, 0
    %p58 = por %p56, %p57
    %p59 = scmp.ne.s32.totalorder %s47, %s48
    %p60 = scmp.eq.s32.totalorder %s17, 1
    %p61 = por %p59, %p60
    %p63 = scmp.ne.s32.totalorder %s48, %s62
    %p64 = scmp.eq.s32.totalorder %s17, 0
    %p65 = por %p63, %p64
    %s67 = sadd.s32 %s66, 1
    %p70 = scmp.eq.s32.totalorder %s11, 1
    %p71 = scmp.ne.s32.totalorder %s66, %s68
    %p72 = scmp.eq.s32.totalorder %s11, 0
    %p73 = por %p71, %p72
    %p74 = scmp.ne.s32.totalorder %s66, %s68
    %p75 = scmp.eq.s32.totalorder %s16, 1
    %p76 = por %p74, %p75
    %p77 = scmp.ne.s32.totalorder %s68, %s69
    %p78 = scmp.eq.s32.totalorder %s16, 0
    %p79 = por %p77, %p78
    %p80 = scmp.ne.s32.totalorder %s68, %s69
    %p81 = scmp.eq.s32.totalorder %s17, 1
    %p82 = por %p80, %p81
    %p84 = scmp.ne.s32.totalorder %s69, %s83
    %p85 = scmp.eq.s32.totalorder %s17, 0
    %p86 = por %p84, %p85
    %s88 = sadd.s32 %s87, 1
    %p91 = scmp.eq.s32.totalorder %s11, 1
    %p92 = scmp.ne.s32.totalorder %s87, %s89
    %p93 = scmp.eq.s32.totalorder %s11, 0
    %p94 = por %p92, %p93
    %p95 = scmp.ne.s32.totalorder %s87, %s89
    %p96 = scmp.eq.s32.totalorder %s16, 1
    %p97 = por %p95, %p96
    %p98 = scmp.ne.s32.totalorder %s89, %s90
    %p99 = scmp.eq.s32.totalorder %s16, 0
    %p100 = por %p98, %p99
    %p101 = scmp.ne.s32.totalorder %s89, %s90
    %p102 = scmp.eq.s32.totalorder %s17, 1
    %p103 = por %p101, %p102
    %p105 = scmp.ne.s32.totalorder %s90, %s104
    %p106 = scmp.eq.s32.totalorder %s17, 0
    %p107 = por %p105, %p106
    %s109 = sadd.s32 %s108, 1
    %p112 = scmp.eq.s32.totalorder %s11, 1
    %p113 = scmp.ne.s32.totalorder %s108, %s110
    %p114 = scmp.eq.s32.totalorder %s11, 0
    %p115 = por %p113, %p114
    %p116 = scmp.ne.s32.totalorder %s108, %s110
    %p117 = scmp.eq.s32.totalorder %s16, 1
    %p118 = por %p116, %p117
    %p119 = scmp.ne.s32.totalorder %s110, %s111
    %p120 = scmp.eq.s32.totalorder %s16, 0
    %p121 = por %p119, %p120
    %p122 = scmp.ne.s32.totalorder %s110, %s111
    %p123 = scmp.eq.s32.totalorder %s17, 1
    %p124 = por %p122, %p123
    %p126 = scmp.ne.s32.totalorder %s111, %s125
    %p127 = scmp.eq.s32.totalorder %s17, 0
    %p128 = por %p126, %p127
    %s129 = ssub.s32 %s11, %s18
    %p130 = scmp.eq.s32.totalorder %s129, 0
    %s132 = sadd.s32 %s131, 1
    %s133 = scalar_select %p130, %s131, %s132
    %p136 = pneg %p130
    %p137 = scmp.eq.s32.totalorder %s11, 1
    %p138 = por %p136, %p137
    %p139 = scmp.ne.s32.totalorder %s131, %s134
    %p140 = scmp.eq.s32.totalorder %s11, 0
    %p141 = por %p139, %p140
    %p142 = scmp.ne.s32.totalorder %s131, %s134
    %p143 = scmp.eq.s32.totalorder %s16, 1
    %p144 = por %p142, %p143
    %p145 = scmp.ne.s32.totalorder %s134, %s135
    %p146 = scmp.eq.s32.totalorder %s16, 0
    %p147 = por %p145, %p146
    %p148 = scmp.ne.s32.totalorder %s134, %s135
    %p149 = scmp.eq.s32.totalorder %s17, 1
    %p150 = por %p148, %p149
    %p152 = scmp.ne.s32.totalorder %s135, %s151
    %p153 = scmp.eq.s32.totalorder %s17, 0
    %p154 = por %p152, %p153
    %p155 = scmp.le.s32.totalorder 1, %s11
    %p156 = scmp.lt.s32.totalorder %s11, 3
    %p157 = pnand %p155, %p156
    %p158 = pneg %p157
    // Predicated region
    $region9: #{rc_ca_layer.1} parent=5 // pred_check
      _
    $region10: #{rc_ca_layer.1} parent=5 // pred_check_branch
      %160 = sbr.rel (%p157) target = $region12
    $region11: #{rc_ca_layer.1} parent=5 // pred_region
      %s161 = ssub.s32 %s11, 1
      // Predicated region
      $region13: #{rc_ca_layer.1} parent=11 // pred_check
        %p162 = pneg %p58
      $region14: #{rc_ca_layer.1} parent=11 // pred_check_branch
        %164 = sbr.rel (%p162) target = $region16
      $region15: #{rc_ca_layer.1} parent=11 // pred_region
        _
      $region16: #{rc_ca_layer.1} parent=11 // pred_fallthru
        _
      // Predicated region
      $region17: #{rc_ca_layer.1} parent=11 // pred_check
        %p165 = pneg %p79
      $region18: #{rc_ca_layer.1} parent=11 // pred_check_branch
        %167 = sbr.rel (%p165) target = $region20
      $region19: #{rc_ca_layer.1} parent=11 // pred_region
        _
      $region20: #{rc_ca_layer.1} parent=11 // pred_fallthru
        _
      // Predicated region
      $region21: #{rc_ca_layer.1} parent=11 // pred_check
        %p168 = pneg %p100
      $region22: #{rc_ca_layer.1} parent=11 // pred_check_branch
        %170 = sbr.rel (%p168) target = $region24
      $region23: #{rc_ca_layer.1} parent=11 // pred_region
        _
      $region24: #{rc_ca_layer.1} parent=11 // pred_fallthru
        _
      // Predicated region
      $region25: #{rc_ca_layer.1} parent=11 // pred_check
        %p171 = pneg %p121
      $region26: #{rc_ca_layer.1} parent=11 // pred_check_branch
        %173 = sbr.rel (%p171) target = $region28
      $region27: #{rc_ca_layer.1} parent=11 // pred_region
        _
      $region28: #{rc_ca_layer.1} parent=11 // pred_fallthru
        _
    $region12: #{rc_ca_layer.1} parent=5 // pred_fallthru
      _
    %p174 = scmp.lt.s32.totalorder %s11, 2
    // Predicated region
    $region29: #{rc_ca_layer.1} parent=5 // pred_check
      %p175 = pneg %p174
    $region30: #{rc_ca_layer.1} parent=5 // pred_check_branch
      %177 = sbr.rel (%p175) target = $region32
    $region31: #{rc_ca_layer.1} parent=5 // pred_region
      // Predicated region
      $region33: #{rc_ca_layer.1} parent=31 // pred_check
        %p178 = pneg %p31
      $region34: #{rc_ca_layer.1} parent=31 // pred_check_branch
        %180 = sbr.rel (%p178) target = $region36
      $region35: #{rc_ca_layer.1} parent=31 // pred_region
        %p181 = scmp.lt.s32.totalorder %s11, 1
        %s182 = scalar_select %p181, %s11, 1
        %s183 = smul.addr %s182, 8
        %s184 = smul.addr %s183, 8
        %s185 = scalar_lea.vmem %s0, %s184
      $region36: #{rc_ca_layer.1} parent=31 // pred_fallthru
        _
    $region32: #{rc_ca_layer.1} parent=5 // pred_fallthru
      _
    %p186 = scmp.le.s32.totalorder 1, %s11
    %p187 = scmp.lt.s32.totalorder %s11, 3
    %p188 = pnand %p186, %p187
    %p189 = pneg %p188
    // Predicated region
    $region37: #{rc_ca_layer.1} parent=5 // pred_check
      _
    $region38: #{rc_ca_layer.1} parent=5 // pred_check_branch
      %191 = sbr.rel (%p188) target = $region40
    $region39: #{rc_ca_layer.1} parent=5 // pred_region
      %s192 = ssub.s32 %s11, 1
      %p193 = scmp.lt.s32.totalorder %s16, 1
      %s194 = scalar_select %p193, %s16, 1
      %s195 = smul.addr %s194, 8
      %s196 = smul.addr %s195, 8
      %s197 = scalar_lea.vmem %s0, %s196
      %p198 = pneg %p37
      %p199 = pneg %p34
      %p200 = pneg %p58
      %p201 = pneg %p55
      %p202 = pneg %p79
      %p203 = pneg %p76
      %p204 = pneg %p100
      %p205 = pneg %p97
      %p206 = pneg %p121
      %p207 = pneg %p118
      %p208 = pneg %p147
      %p209 = pneg %p144
      %p210 = scmp.lt.s32.totalorder %s16, 1
      %s211 = scalar_select %p210, %s16, 1
      %s212 = smul.addr %s211, 8
      %s213 = smul.addr %s212, 8
      %s214 = scalar_lea.vmem %s5, %s213
      %p215 = scmp.lt.s32.totalorder %s16, 1
      %s216 = scalar_select %p215, %s16, 1
      %s217 = smul.addr %s216, 8
      %s218 = smul.addr %s217, 8
      %s219 = scalar_lea.vmem %s0, %s218
      %p220 = scmp.lt.s32.totalorder %s16, 1
      %s221 = scalar_select %p220, %s16, 1
      %s222 = smul.addr %s221, 8
      %s223 = smul.addr %s222, 8
      %s224 = scalar_lea.vmem %s5, %s223
      %v225 = vld [vmem:[%s219] sm:$0xff]
      %v226 = vld [vmem:[%s219 + $0x8] sm:$0xff]
      %v227 = vld [vmem:[%s219 + $0x10] sm:$0xff]
      %v228 = vld [vmem:[%s219 + $0x18] sm:$0xff]
      %v229 = vld [vmem:[%s219 + $0x20] sm:$0xff]
      %v230 = vld [vmem:[%s219 + $0x28] sm:$0xff]
      %v231 = vld [vmem:[%s219 + $0x30] sm:$0xff]
      %v232 = vld [vmem:[%s219 + $0x38] sm:$0xff]
      %233 = vmatprep.subr.mxu0 0.0
      %234 = vmatpush1.msra.mxu0 1.0
      %235 = vmatprep.subr.mxu0 0.0
      %236 = vmatpush1.msra.mxu0 1.0
      %237 = vmatprep.subr.mxu0 0.0
      %238 = vmatpush1.msra.mxu0 1.0
      %239 = vmatprep.subr.mxu0 0.0
      %240 = vmatpush1.msra.mxu0 1.0
      %241 = vmatprep.subr.mxu0 0.0
      %242 = vmatpush1.msra.mxu0 1.0
      %243 = vmatprep.subr.mxu0 0.0
      %244 = vmatpush1.msra.mxu0 1.0
      %245 = vmatprep.subr.mxu0 0.0
      %246 = vmatpush1.msra.mxu0 1.0
      %247 = vmatprep.subr.mxu0 0.0
      %248 = vmatpush1.msra.mxu0 1.0
      %249 = vmatprep.subr.mxu0 0.0
      %250 = vmatpush1.msra.mxu0 1.0
      %251 = vmatprep.subr.mxu0 0.0
      %252 = vmatpush1.msra.mxu0 1.0
      %253 = vmatprep.subr.mxu0 0.0
      %254 = vmatpush1.msra.mxu0 1.0
      %255 = vmatprep.subr.mxu0 0.0
      %256 = vmatpush1.msra.mxu0 1.0
      %257 = vmatprep.subr.mxu0 0.0
      %258 = vmatpush1.msra.mxu0 1.0
      %259 = vmatprep.subr.mxu0 0.0
      %260 = vmatpush1.msra.mxu0 1.0
      %261 = vmatprep.subr.mxu0 0.0
      %262 = vmatpush1.msra.mxu0 1.0
      %263 = vmatprep.subr.mxu0 0.0
      %264 = vmatpush1.msra.mxu0 1.0
      %265 = vmatprep.subr.mxu0 0.0
      %266 = vmatpush1.msra.mxu0 1.0
      %267 = vmatprep.subr.mxu0 0.0
      %268 = vmatpush1.msra.mxu0 1.0
      %269 = vmatprep.subr.mxu0 0.0
      %270 = vmatpush1.msra.mxu0 1.0
      %271 = vmatprep.subr.mxu0 0.0
      %272 = vmatpush1.msra.mxu0 1.0
      %273 = vmatprep.subr.mxu0 0.0
      %274 = vmatpush1.msra.mxu0 1.0
      %275 = vmatprep.subr.mxu0 0.0
      %276 = vmatpush1.msra.mxu0 1.0
      %277 = vmatprep.subr.mxu0 0.0
      %278 = vmatpush1.msra.mxu0 1.0
      %279 = vmatprep.subr.mxu0 0.0
      %280 = vmatpush1.msra.mxu0 1.0
      %281 = vmatprep.subr.mxu0 0.0
      %282 = vmatpush1.msra.mxu0 1.0
      %283 = vmatprep.subr.mxu0 0.0
      %284 = vmatpush1.msra.mxu0 1.0
      %285 = vmatprep.subr.mxu0 0.0
      %286 = vmatpush1.msra.mxu0 1.0
      %287 = vmatprep.subr.mxu0 0.0
      %288 = vmatpush1.msra.mxu0 1.0
      %289 = vmatprep.subr.mxu0 0.0
      %290 = vmatpush1.msra.mxu0 1.0
      %291 = vmatprep.subr.mxu0 0.0
      %292 = vmatpush1.msra.mxu0 1.0
      %293 = vmatprep.subr.mxu0 0.0
      %294 = vmatpush1.msra.mxu0 1.0
      %295 = vmatprep.subr.mxu0 0.0
      %296 = vmatpush1.msra.mxu0 1.0
      %297 = vmatprep.mubr.f32.mxu0 %v226
      %298 = vmatmul.mubr.f32.gmra.mrb[0].mxu0 %v225
      %v299 = vpop.f32.mrb[0].mxu0
      %v300 = vadd.f32 0.0, %v299
      %v301 = vpop.f32.mrb[0].mxu0
      %302 = vmatprep.mubr.f32.mxu0 %v228
      %303 = vmatmul.mubr.f32.gmra.mrb[0].mxu0 %v227
      %v304 = vpop.f32.mrb[0].mxu0
      %v305 = vadd.f32 0.0, %v304
      %v306 = vpop.f32.mrb[0].mxu0
      %307 = vmatprep.mubr.f32.mxu0 %v230
      %308 = vmatmul.mubr.f32.gmra.mrb[0].mxu0 %v229
      %v309 = vpop.f32.mrb[0].mxu0
      %v310 = vadd.f32 0.0, %v309
      %v311 = vpop.f32.mrb[0].mxu0
      %312 = vmatprep.mubr.f32.mxu0 %v232
      %313 = vmatmul.mubr.f32.gmra.mrb[0].mxu0 %v231
      %v314 = vpop.f32.mrb[0].mxu0
      %v315 = vadd.f32 0.0, %v314
      %v316 = vpop.f32.mrb[0].mxu0
      %317 = vdwg.mxu0
      %v318 = vmul.f32 %v300, 0.00390625
      %v319 = vmul.f32 %v305, 0.00390625
      %v320 = vmul.f32 %v310, 0.00390625
      %v321 = vmul.f32 %v315, 0.00390625
      %v322 = vld [vmem:[%s1] sm:$0x3]
      %v323 = vld [vmem:[%s2] sm:$0x3]
      %vm324 = vcmask 261120
      %v326 = vsel %vm324, %v322, 0
      %328 = vmatprep.subr.mxu0 0.0
      %329 = vmatpush1.msra.mxu0 %v318
      %330 = vmatprep.subr.mxu0 0.0
      %331 = vmatpush1.msra.mxu0 %v319
      %332 = vmatprep.subr.mxu0 0.0
      %333 = vmatpush1.msra.mxu0 %v320
      %334 = vmatprep.subr.mxu0 0.0
      %335 = vmatpush1.msra.mxu0 %v321
      %336 = vmatprep.subr.mxu0 0.0
      %337 = vmatpush1.msra.mxu0 0.0
      %338 = vmatprep.subr.mxu0 0.0
      %339 = vmatpush1.msra.mxu0 0.0
      %340 = vmatprep.subr.mxu0 0.0
      %341 = vmatpush1.msra.mxu0 0.0
      %342 = vmatprep.subr.mxu0 0.0
      %343 = vmatpush1.msra.mxu0 0.0
      %344 = vmatprep.subr.mxu0 0.0
      %345 = vmatpush1.msra.mxu0 0.0
      %346 = vmatprep.subr.mxu0 0.0
      %347 = vmatpush1.msra.mxu0 0.0
      %348 = vmatprep.subr.mxu0 0.0
      %349 = vmatpush1.msra.mxu0 0.0
      %350 = vmatprep.subr.mxu0 0.0
      %351 = vmatpush1.msra.mxu0 0.0
      %352 = vmatprep.subr.mxu0 0.0
      %353 = vmatpush1.msra.mxu0 0.0
      %354 = vmatprep.subr.mxu0 0.0
      %355 = vmatpush1.msra.mxu0 0.0
      %356 = vmatprep.subr.mxu0 0.0
      %357 = vmatpush1.msra.mxu0 0.0
      %358 = vmatprep.subr.mxu0 0.0
      %359 = vmatpush1.msra.mxu0 0.0
      %360 = vmatprep.subr.mxu0 0.0
      %361 = vmatpush1.msra.mxu0 0.0
      %362 = vmatprep.subr.mxu0 0.0
      %363 = vmatpush1.msra.mxu0 0.0
      %364 = vmatprep.subr.mxu0 0.0
      %365 = vmatpush1.msra.mxu0 0.0
      %366 = vmatprep.subr.mxu0 0.0
      %367 = vmatpush1.msra.mxu0 0.0
      %368 = vmatprep.subr.mxu0 0.0
      %369 = vmatpush1.msra.mxu0 0.0
      %370 = vmatprep.subr.mxu0 0.0
      %371 = vmatpush1.msra.mxu0 0.0
      %372 = vmatprep.subr.mxu0 0.0
      %373 = vmatpush1.msra.mxu0 0.0
      %374 = vmatprep.subr.mxu0 0.0
      %375 = vmatpush1.msra.mxu0 0.0
      %376 = vmatprep.subr.mxu0 0.0
      %377 = vmatpush1.msra.mxu0 0.0
      %378 = vmatprep.subr.mxu0 0.0
      %379 = vmatpush1.msra.mxu0 0.0
      %380 = vmatprep.subr.mxu0 0.0
      %381 = vmatpush1.msra.mxu0 0.0
      %382 = vmatprep.subr.mxu0 0.0
      %383 = vmatpush1.msra.mxu0 0.0
      %384 = vmatprep.subr.mxu0 0.0
      %385 = vmatpush1.msra.mxu0 0.0
      %386 = vmatprep.subr.mxu0 0.0
      %387 = vmatpush1.msra.mxu0 0.0
      %388 = vmatprep.subr.mxu0 0.0
      %389 = vmatpush1.msra.mxu0 0.0
      %390 = vmatprep.subr.mxu0 0.0
      %391 = vmatpush1.msra.mxu0 0.0
      %392 = vmatprep.mubr.f32.mxu0 0.0
      %393 = vmatmul.mubr.f32.gmra.mrb[0].mxu0 %v326
      %v394 = vpop.f32.mrb[0].mxu0
      %v395 = vadd.f32 %v323, %v394
      %v396 = vpop.f32.mrb[0].mxu0
      %397 = vdwg.mxu0
      %v398 = vmax.f32 %v395, 0.0
      %v399 = vld [vmem:[%s3] sm:$0xff]
      %v400 = vld [vmem:[%s3 + $0x8] sm:$0xff]
      %v401 = vld [vmem:[%s3 + $0x10] sm:$0xff]
      %v402 = vld [vmem:[%s3 + $0x18] sm:$0xff]
      %v403 = vld [vmem:[%s4] sm:$0xff]
      %v404 = vld [vmem:[%s4 + $0x8] sm:$0xff]
      %v405 = vld [vmem:[%s4 + $0x10] sm:$0xff]
      %v406 = vld [vmem:[%s4 + $0x18] sm:$0xff]
      %vm407 = vcmask 15360
      %v409 = vsel %vm407, %v399, 0
      %v412 = vsel %vm407, %v400, 0
      %v415 = vsel %vm407, %v401, 0
      %v418 = vsel %vm407, %v402, 0
      %vm420 = vcmask 1041408
      %v422 = vsel %vm420, %v398, 0
      %424 = vmatprep.subr.mxu0 0.0
      %425 = vmatpush1.msra.mxu0 %v422
      %426 = vmatprep.subr.mxu0 0.0
      %427 = vmatpush1.msra.mxu0 0.0
      %428 = vmatprep.subr.mxu0 0.0
      %429 = vmatpush1.msra.mxu0 0.0
      %430 = vmatprep.subr.mxu0 0.0
      %431 = vmatpush1.msra.mxu0 0.0
      %432 = vmatprep.subr.mxu0 0.0
      %433 = vmatpush1.msra.mxu0 0.0
      %434 = vmatprep.subr.mxu0 0.0
      %435 = vmatpush1.msra.mxu0 0.0
      %436 = vmatprep.subr.mxu0 0.0
      %437 = vmatpush1.msra.mxu0 0.0
      %438 = vmatprep.subr.mxu0 0.0
      %439 = vmatpush1.msra.mxu0 0.0
      %440 = vmatprep.subr.mxu0 0.0
      %441 = vmatpush1.msra.mxu0 0.0
      %442 = vmatprep.subr.mxu0 0.0
      %443 = vmatpush1.msra.mxu0 0.0
      %444 = vmatprep.subr.mxu0 0.0
      %445 = vmatpush1.msra.mxu0 0.0
      %446 = vmatprep.subr.mxu0 0.0
      %447 = vmatpush1.msra.mxu0 0.0
      %448 = vmatprep.subr.mxu0 0.0
      %449 = vmatpush1.msra.mxu0 0.0
      %450 = vmatprep.subr.mxu0 0.0
      %451 = vmatpush1.msra.mxu0 0.0
      %452 = vmatprep.subr.mxu0 0.0
      %453 = vmatpush1.msra.mxu0 0.0
      %454 = vmatprep.subr.mxu0 0.0
      %455 = vmatpush1.msra.mxu0 0.0
      %456 = vmatprep.subr.mxu0 0.0
      %457 = vmatpush1.msra.mxu0 0.0
      %458 = vmatprep.subr.mxu0 0.0
      %459 = vmatpush1.msra.mxu0 0.0
      %460 = vmatprep.subr.mxu0 0.0
      %461 = vmatpush1.msra.mxu0 0.0
      %462 = vmatprep.subr.mxu0 0.0
      %463 = vmatpush1.msra.mxu0 0.0
      %464 = vmatprep.subr.mxu0 0.0
      %465 = vmatpush1.msra.mxu0 0.0
      %466 = vmatprep.subr.mxu0 0.0
      %467 = vmatpush1.msra.mxu0 0.0
      %468 = vmatprep.subr.mxu0 0.0
      %469 = vmatpush1.msra.mxu0 0.0
      %470 = vmatprep.subr.mxu0 0.0
      %471 = vmatpush1.msra.mxu0 0.0
      %472 = vmatprep.subr.mxu0 0.0
      %473 = vmatpush1.msra.mxu0 0.0
      %474 = vmatprep.subr.mxu0 0.0
      %475 = vmatpush1.msra.mxu0 0.0
      %476 = vmatprep.subr.mxu0 0.0
      %477 = vmatpush1.msra.mxu0 0.0
      %478 = vmatprep.subr.mxu0 0.0
      %479 = vmatpush1.msra.mxu0 0.0
      %480 = vmatprep.subr.mxu0 0.0
      %481 = vmatpush1.msra.mxu0 0.0
      %482 = vmatprep.subr.mxu0 0.0
      %483 = vmatpush1.msra.mxu0 0.0
      %484 = vmatprep.subr.mxu0 0.0
      %485 = vmatpush1.msra.mxu0 0.0
      %486 = vmatprep.subr.mxu0 0.0
      %487 = vmatpush1.msra.mxu0 0.0
      %488 = vmatprep.mubr.f32.mxu0 0.0
      %489 = vmatmul.mubr.f32.gmra.mrb[0].mxu0 %v409
      %v490 = vpop.f32.mrb[0].mxu0
      %v491 = vadd.f32 %v403, %v490
      %v492 = vpop.f32.mrb[0].mxu0
      %493 = vmatprep.mubr.f32.mxu0 0.0
      %494 = vmatmul.mubr.f32.gmra.mrb[0].mxu0 %v412
      %v495 = vpop.f32.mrb[0].mxu0
      %v496 = vadd.f32 %v404, %v495
      %v497 = vpop.f32.mrb[0].mxu0
      %498 = vmatprep.mubr.f32.mxu0 0.0
      %499 = vmatmul.mubr.f32.gmra.mrb[0].mxu0 %v415
      %v500 = vpop.f32.mrb[0].mxu0
      %v501 = vadd.f32 %v405, %v500
      %v502 = vpop.f32.mrb[0].mxu0
      %503 = vmatprep.mubr.f32.mxu0 0.0
      %504 = vmatmul.mubr.f32.gmra.mrb[0].mxu0 %v418
      %v505 = vpop.f32.mrb[0].mxu0
      %v506 = vadd.f32 %v406, %v505
      %v507 = vpop.f32.mrb[0].mxu0
      %508 = vdwg.mxu0
      %v509 = vxor.u32 %v491, 2147483648
      %v510 = vxor.u32 %v496, 2147483648
      %v511 = vxor.u32 %v501, 2147483648
      %v512 = vxor.u32 %v506, 2147483648
      %v513 = vmul.f32 %v509, 1.442695
      %v514 = vpow.pop %v513
      %v515 = vmul.f32 %v510, 1.442695
      %v516 = vpow.pop %v515
      %v517 = vmul.f32 %v511, 1.442695
      %v518 = vpow.pop %v517
      %v519 = vmul.f32 %v512, 1.442695
      %v520 = vpow.pop %v519
      %v521 = vadd.f32 %v514, 1.0
      %v522 = vadd.f32 %v516, 1.0
      %v523 = vadd.f32 %v518, 1.0
      %v524 = vadd.f32 %v520, 1.0
      %v525 = vrcp.pop %v521
      %v526 = vmul.f32 1.0, %v525
      %v527 = vrcp.pop %v522
      %v528 = vmul.f32 1.0, %v527
      %v529 = vrcp.pop %v523
      %v530 = vmul.f32 1.0, %v529
      %v531 = vrcp.pop %v524
      %v532 = vmul.f32 1.0, %v531
      %534 = vset.pattern.permute.xlu0 0
      %535 = vperm.xlu0 %534, %v526
      %v536 = vpop.permute.xlu0 %535
      %539 = vset.pattern.permute.xlu0 0
      %540 = vperm.xlu0 %539, %v528
      %v541 = vpop.permute.xlu0 %540
      %544 = vset.pattern.permute.xlu0 0
      %545 = vperm.xlu0 %544, %v530
      %v546 = vpop.permute.xlu0 %545
      %549 = vset.pattern.permute.xlu0 0
      %550 = vperm.xlu0 %549, %v532
      %v551 = vpop.permute.xlu0 %550
      %v553 = vmul.f32 %v225, %v536
      %v554 = vmul.f32 %v226, %v536
      %v555 = vmul.f32 %v227, %v541
      %v556 = vmul.f32 %v228, %v541
      %v557 = vmul.f32 %v229, %v546
      %v558 = vmul.f32 %v230, %v546
      %v559 = vmul.f32 %v231, %v551
      %v560 = vmul.f32 %v232, %v551
      %561 = vst [vmem:[%s224] sm:$0xff] %v553
      %562 = vst [vmem:[%s224 + $0x8] sm:$0xff] %v554
      %563 = vst [vmem:[%s224 + $0x10] sm:$0xff] %v555
      %564 = vst [vmem:[%s224 + $0x18] sm:$0xff] %v556
      %565 = vst [vmem:[%s224 + $0x20] sm:$0xff] %v557
      %566 = vst [vmem:[%s224 + $0x28] sm:$0xff] %v558
      %567 = vst [vmem:[%s224 + $0x30] sm:$0xff] %v559
      %568 = vst [vmem:[%s224 + $0x38] sm:$0xff] %v560
      %p569 = scmp.lt.s32.totalorder %s16, 1
      %s570 = scalar_select %p569, %s16, 1
      %s571 = smul.addr %s570, 8
      %s572 = smul.addr %s571, 8
      %s573 = scalar_lea.vmem %s5, %s572
      // Predicated region
      $region41: #{rc_ca_layer.1} parent=39 // pred_check
        %p574 = pneg %p144
      $region42: #{rc_ca_layer.1} parent=39 // pred_check_branch
        %576 = sbr.rel (%p574) target = $region44
      $region43: #{rc_ca_layer.1} parent=39 // pred_region
        _
      $region44: #{rc_ca_layer.1} parent=39 // pred_fallthru
        _
    $region40: #{rc_ca_layer.1} parent=5 // pred_fallthru
      _
    %p577 = scmp.le.s32.totalorder 2, %s11
    // Predicated region
    $region45: #{rc_ca_layer.1} parent=5 // pred_check
      %p578 = pneg %p577
    $region46: #{rc_ca_layer.1} parent=5 // pred_check_branch
      %580 = sbr.rel (%p578) target = $region48
    $region47: #{rc_ca_layer.1} parent=5 // pred_region
      %s581 = ssub.s32 %s11, 2
      // Predicated region
      $region49: #{rc_ca_layer.1} parent=47 // pred_check
        %p582 = pneg %p150
      $region50: #{rc_ca_layer.1} parent=47 // pred_check_branch
        %584 = sbr.rel (%p582) target = $region52
      $region51: #{rc_ca_layer.1} parent=47 // pred_region
        %p585 = scmp.lt.s32.totalorder %s17, 1
        %s586 = scalar_select %p585, %s17, 1
        %s587 = smul.addr %s586, 8
        %s588 = smul.addr %s587, 8
        %s589 = scalar_lea.vmem %s5, %s588
      $region52: #{rc_ca_layer.1} parent=47 // pred_fallthru
        _
    $region48: #{rc_ca_layer.1} parent=5 // pred_fallthru
      _
  $region6: #{rc_ca_layer.1} parent=0 // loop_footer
    %s15 = sadd.s32 1, %s11
  $region7: #{rc_ca_layer.1} parent=0 // loop_footer_branch
    %10 = sbr.rel target = $region3
  $region8: #{rc_ca_layer.1} parent=0 // loop_exit
    _

</llo_original>
